<compile_context>
chip_gen: v7x
topology: tpu7x:2x2x1
jax: 0.10.0
libtpu: 0.0.40
codegen_flags: <defaults>
</compile_context>

<pallas_src>
import functools

import jax
import jax.numpy as jnp
from jax.experimental import pallas as pl
from jax.experimental.pallas import tpu as pltpu


def _round_up(x, m):
    return ((x + m - 1) // m) * m


# ----------------------------- Pallas kernel ------------------------------- #
def conv_bn_relu_kernel(x_ref, w_ref, b_ref, o_ref, *, nb, cin, use_mxu):
    # x_ref : (nb, Cin, tL)   lane-dense tile (tL multiple of 128)
    # w_ref : (Cout, Cin)     conv weight with BN scale folded in (VMEM-resident)
    # b_ref : (Cout, 1)       conv bias + BN shift folded together (VMEM-resident)
    # o_ref : (nb, Cout, tL)
    w = w_ref[...]
    b = b_ref[...]
    for bi in range(nb):                       # static unroll, nb <= 8
        x = x_ref[bi]                          # (Cin, tL)
        if use_mxu:
            y = jnp.dot(w, x, preferred_element_type=jnp.float32)
        else:
            # Degenerate-MXU shape (K=Cin, M=Cout tiny): do the contraction on
            # the VPU as Cin rank-1 broadcast-FMAs, (Cout,1)*(1,tL) each,
            # avoiding MXU push/pop latency on the critical path.
            y = w[:, 0:1] * x[0:1, :]
            for c in range(1, cin):
                y = y + w[:, c:c+1] * x[c:c+1, :]
        o_ref[bi] = jnp.maximum(y + b, 0.0).astype(o_ref.dtype)


def conv_residual_pallas(x, w_fold, b_fold, *, vmem_budget_bytes=8 * 1024 * 1024):
    """x: (N, Cin, H, W), w_fold: (Cout, Cin), b_fold: (Cout, 1) -> (N, Cout, H, W)."""
    N, Cin, H, W = x.shape
    Cout = w_fold.shape[0]
    L = H * W
    itemsize = jnp.dtype(x.dtype).itemsize

    # ---- lane tile size: multiple of 128, VMEM-budgeted (v7x-safe) ----
    # Per grid step (nb=1): 2 buffers x (Cin + Cout) x tL x itemsize bytes.
    # Budget is kept well under the 32 MiB default scoped VMEM, so no
    # vmem_limit_bytes override is needed on any generation.
    max_lanes = vmem_budget_bytes // (2 * (Cin + Cout) * itemsize)
    max_lanes = max(128, (max_lanes // 128) * 128)
    tL = min(max_lanes, _round_up(L, 128))
    nL = pl.cdiv(L, tL)
    L_full = nL * tL                               # padded lane extent

    # ---- batch packing: fatter steps when one lane tile covers the image ----
    # Grid steps cost ~0.35us each on single-TC chips; only pack batch when the
    # L axis cannot provide work (nL == 1) and each step would otherwise be tiny.
    nb = 1
    if nL == 1:
        step_x_bytes = Cin * tL * itemsize
        target_step_bytes = 512 * 1024             # ~0.5 MiB of input per step
        nb = int(min(N, 8, max(1, target_step_bytes // max(step_x_bytes, 1))))
        while N % nb:                              # nb must divide N evenly
            nb -= 1
    n_batch_blocks = N // nb

    # ---- layout: pure reshape (no HBM transpose), zero-pad lanes if needed ----
    x3 = x.reshape(N, Cin, L)
    if L_full != L:
        x3 = jnp.pad(x3, ((0, 0), (0, 0), (0, L_full - L)))

    kernel = functools.partial(
        conv_bn_relu_kernel, nb=nb, cin=Cin,
        use_mxu=(Cin >= 64 and Cout >= 64))        # MXU only when it is not wasted

    out = pl.pallas_call(
        kernel,
        out_shape=jax.ShapeDtypeStruct((N, Cout, L_full), x.dtype),
        grid=(n_batch_blocks, nL),
        in_specs=[
            pl.BlockSpec((nb, Cin, tL), lambda i, j: (i, 0, j)),
            pl.BlockSpec((Cout, Cin), lambda i, j: (0, 0)),   # VMEM-resident weight
            pl.BlockSpec((Cout, 1), lambda i, j: (0, 0)),     # VMEM-resident bias
        ],
        out_specs=pl.BlockSpec((nb, Cout, tL), lambda i, j: (i, 0, j)),
        compiler_params=pltpu.CompilerParams(
            dimension_semantics=("parallel", "parallel")),
    )(x3, w_fold, b_fold)

    if L_full != L:
        out = out[:, :, :L]
    return out.reshape(N, Cout, H, W)


# ------------------------ parameter init (PyTorch-like) --------------------- #
def init_params(key, in_ch, out_ch):
    # Conv2d(in_ch, out_ch, 1): kaiming_normal_(mode='fan_out') -> std=sqrt(2/fan_out),
    # fan_out = out_ch * 1 * 1; bias initialized to 0.
    W = jax.random.normal(key, (out_ch, in_ch), jnp.float32) * jnp.sqrt(2.0 / out_ch)
    conv_bias = jnp.zeros((out_ch,), jnp.float32)
    # bn_init(bn, 1): gamma=1, beta=0; eval-mode running stats.
    bn = dict(gamma=jnp.ones((out_ch,), jnp.float32),
              beta=jnp.zeros((out_ch,), jnp.float32),
              mean=jnp.zeros((out_ch,), jnp.float32),
              var=jnp.ones((out_ch,), jnp.float32),
              eps=1e-5)
    return dict(W=W, conv_bias=conv_bias, bn=bn)


def fold_params(params):
    """Fold eval-mode BatchNorm into the 1x1-conv weight and bias."""
    bn = params['bn']
    scale = bn['gamma'] / jnp.sqrt(bn['var'] + bn['eps'])        # (Cout,)
    w_fold = params['W'] * scale[:, None]                        # (Cout, Cin)
    b_fold = ((params['conv_bias'] - bn['mean']) * scale + bn['beta'])[:, None]
    return w_fold, b_fold                                        # (Cout, Cin), (Cout, 1)


# ------------------------------ JAX reference ------------------------------- #
def reference_forward(x, params):
    y = jnp.einsum('nchw,oc->nohw', x, params['W']) \
        + params['conv_bias'][None, :, None, None]
    bn = params['bn']
    y = ((y - bn['mean'][None, :, None, None])
         / jnp.sqrt(bn['var'][None, :, None, None] + bn['eps'])
         * bn['gamma'][None, :, None, None] + bn['beta'][None, :, None, None])
    return jnp.maximum(y, 0.0)


# ----------------------------------- main ----------------------------------- #
if __name__ == "__main__":
    N, Cin, Cout, H, W = 2, 4, 8, 16, 16   # H*W = 256 -> lane-dense, no padding

    key = jax.random.PRNGKey(0)
    kp, kx = jax.random.split(key)
    params = init_params(kp, Cin, Cout)
    x = jax.random.normal(kx, (N, Cin, H, W), jnp.float32)

    w_fold, b_fold = fold_params(params)
    out = conv_residual_pallas(x, w_fold, b_fold)
    out = jax.block_until_ready(out)

    ref = reference_forward(x, params)
    assert out.shape == ref.shape == (N, Cout, H, W)
    max_err = float(jnp.max(jnp.abs(out - ref)))
    assert max_err < 1e-4, f"mismatch vs reference, max_err={max_err}"
    print("KERNEL_OK")
</pallas_src>

<mosaic_0001>
module attributes {stable_mosaic.version = 11 : i64} {
  func.func @conv_bn_relu_kernel(%arg0: i32, %arg1: i32, %arg2: memref<2x4x256xf32, #tpu.memory_space<vmem>>, %arg3: memref<8x4xf32, #tpu.memory_space<vmem>>, %arg4: memref<8x1xf32, #tpu.memory_space<vmem>>, %arg5: memref<2x8x256xf32, #tpu.memory_space<vmem>>) attributes {dimension_semantics = [#tpu.dimension_semantics<parallel>, #tpu.dimension_semantics<parallel>], iteration_bounds = array<i64: 1, 1>, scalar_prefetch = 0 : i64, scratch_operands = 0 : i64, tpu.core_type = #tpu.core_type<tc>, window_params = [{transform_indices = @transform_0, window_bounds = array<i64: 2, 4, 256>}, {pipeline_mode = #tpu.pipeline_mode<synchronous>, transform_indices = @transform_1, window_bounds = array<i64: 8, 4>}, {pipeline_mode = #tpu.pipeline_mode<synchronous>, transform_indices = @transform_2, window_bounds = array<i64: 8, 1>}, {transform_indices = @transform_3, window_bounds = array<i64: 2, 8, 256>}]} {
    %c0 = arith.constant 0 : index
    %c0_0 = arith.constant 0 : index
    %0 = vector.load %arg3[%c0, %c0_0] : memref<8x4xf32, #tpu.memory_space<vmem>>, vector<8x4xf32>
    %c0_1 = arith.constant 0 : index
    %c0_2 = arith.constant 0 : index
    %1 = vector.load %arg4[%c0_1, %c0_2] : memref<8x1xf32, #tpu.memory_space<vmem>>, vector<8x1xf32>
    %c0_3 = arith.constant 0 : index
    %c0_4 = arith.constant 0 : index
    %c0_5 = arith.constant 0 : index
    %2 = vector.load %arg2[%c0_3, %c0_4, %c0_5] : memref<2x4x256xf32, #tpu.memory_space<vmem>>, vector<1x4x256xf32>
    %3 = vector.shape_cast %2 : vector<1x4x256xf32> to vector<4x256xf32>
    %4 = vector.extract_strided_slice %0 {offsets = [0, 0], sizes = [8, 1], strides = [1, 1]} : vector<8x4xf32> to vector<8x1xf32>
    %5 = vector.extract_strided_slice %3 {offsets = [0, 0], sizes = [1, 256], strides = [1, 1]} : vector<4x256xf32> to vector<1x256xf32>
    %6 = vector.broadcast %4 : vector<8x1xf32> to vector<8x256xf32>
    %7 = vector.broadcast %5 : vector<1x256xf32> to vector<8x256xf32>
    %8 = arith.mulf %6, %7 : vector<8x256xf32>
    %9 = vector.extract_strided_slice %0 {offsets = [0, 1], sizes = [8, 1], strides = [1, 1]} : vector<8x4xf32> to vector<8x1xf32>
    %10 = vector.extract_strided_slice %3 {offsets = [1, 0], sizes = [1, 256], strides = [1, 1]} : vector<4x256xf32> to vector<1x256xf32>
    %11 = vector.broadcast %9 : vector<8x1xf32> to vector<8x256xf32>
    %12 = vector.broadcast %10 : vector<1x256xf32> to vector<8x256xf32>
    %13 = arith.mulf %11, %12 : vector<8x256xf32>
    %14 = arith.addf %8, %13 : vector<8x256xf32>
    %15 = vector.extract_strided_slice %0 {offsets = [0, 2], sizes = [8, 1], strides = [1, 1]} : vector<8x4xf32> to vector<8x1xf32>
    %16 = vector.extract_strided_slice %3 {offsets = [2, 0], sizes = [1, 256], strides = [1, 1]} : vector<4x256xf32> to vector<1x256xf32>
    %17 = vector.broadcast %15 : vector<8x1xf32> to vector<8x256xf32>
    %18 = vector.broadcast %16 : vector<1x256xf32> to vector<8x256xf32>
    %19 = arith.mulf %17, %18 : vector<8x256xf32>
    %20 = arith.addf %14, %19 : vector<8x256xf32>
    %21 = vector.extract_strided_slice %0 {offsets = [0, 3], sizes = [8, 1], strides = [1, 1]} : vector<8x4xf32> to vector<8x1xf32>
    %22 = vector.extract_strided_slice %3 {offsets = [3, 0], sizes = [1, 256], strides = [1, 1]} : vector<4x256xf32> to vector<1x256xf32>
    %23 = vector.broadcast %21 : vector<8x1xf32> to vector<8x256xf32>
    %24 = vector.broadcast %22 : vector<1x256xf32> to vector<8x256xf32>
    %25 = arith.mulf %23, %24 : vector<8x256xf32>
    %26 = arith.addf %20, %25 : vector<8x256xf32>
    %27 = vector.broadcast %1 : vector<8x1xf32> to vector<8x256xf32>
    %28 = arith.addf %26, %27 : vector<8x256xf32>
    %cst = arith.constant 0.000000e+00 : f32
    %29 = vector.broadcast %cst : f32 to vector<8x256xf32>
    %30 = arith.maximumf %28, %29 : vector<8x256xf32>
    %c0_6 = arith.constant 0 : index
    %c0_7 = arith.constant 0 : index
    %c0_8 = arith.constant 0 : index
    %31 = vector.load %arg5[%c0_6, %c0_7, %c0_8] : memref<2x8x256xf32, #tpu.memory_space<vmem>>, vector<1x8x256xf32>
    %32 = vector.shape_cast %31 : vector<1x8x256xf32> to vector<8x256xf32>
    %33 = vector.shape_cast %30 : vector<8x256xf32> to vector<1x8x256xf32>
    tpu.vector_store %arg5[%c0_6, %c0_7, %c0_8], %33 {strides = array<i32>} : memref<2x8x256xf32, #tpu.memory_space<vmem>>, vector<1x8x256xf32>,
    %c1 = arith.constant 1 : index
    %c0_9 = arith.constant 0 : index
    %c0_10 = arith.constant 0 : index
    %34 = vector.load %arg2[%c1, %c0_9, %c0_10] : memref<2x4x256xf32, #tpu.memory_space<vmem>>, vector<1x4x256xf32>
    %35 = vector.shape_cast %34 : vector<1x4x256xf32> to vector<4x256xf32>
    %36 = vector.extract_strided_slice %0 {offsets = [0, 0], sizes = [8, 1], strides = [1, 1]} : vector<8x4xf32> to vector<8x1xf32>
    %37 = vector.extract_strided_slice %35 {offsets = [0, 0], sizes = [1, 256], strides = [1, 1]} : vector<4x256xf32> to vector<1x256xf32>
    %38 = vector.broadcast %36 : vector<8x1xf32> to vector<8x256xf32>
    %39 = vector.broadcast %37 : vector<1x256xf32> to vector<8x256xf32>
    %40 = arith.mulf %38, %39 : vector<8x256xf32>
    %41 = vector.extract_strided_slice %0 {offsets = [0, 1], sizes = [8, 1], strides = [1, 1]} : vector<8x4xf32> to vector<8x1xf32>
    %42 = vector.extract_strided_slice %35 {offsets = [1, 0], sizes = [1, 256], strides = [1, 1]} : vector<4x256xf32> to vector<1x256xf32>
    %43 = vector.broadcast %41 : vector<8x1xf32> to vector<8x256xf32>
    %44 = vector.broadcast %42 : vector<1x256xf32> to vector<8x256xf32>
    %45 = arith.mulf %43, %44 : vector<8x256xf32>
    %46 = arith.addf %40, %45 : vector<8x256xf32>
    %47 = vector.extract_strided_slice %0 {offsets = [0, 2], sizes = [8, 1], strides = [1, 1]} : vector<8x4xf32> to vector<8x1xf32>
    %48 = vector.extract_strided_slice %35 {offsets = [2, 0], sizes = [1, 256], strides = [1, 1]} : vector<4x256xf32> to vector<1x256xf32>
    %49 = vector.broadcast %47 : vector<8x1xf32> to vector<8x256xf32>
    %50 = vector.broadcast %48 : vector<1x256xf32> to vector<8x256xf32>
    %51 = arith.mulf %49, %50 : vector<8x256xf32>
    %52 = arith.addf %46, %51 : vector<8x256xf32>
    %53 = vector.extract_strided_slice %0 {offsets = [0, 3], sizes = [8, 1], strides = [1, 1]} : vector<8x4xf32> to vector<8x1xf32>
    %54 = vector.extract_strided_slice %35 {offsets = [3, 0], sizes = [1, 256], strides = [1, 1]} : vector<4x256xf32> to vector<1x256xf32>
    %55 = vector.broadcast %53 : vector<8x1xf32> to vector<8x256xf32>
    %56 = vector.broadcast %54 : vector<1x256xf32> to vector<8x256xf32>
    %57 = arith.mulf %55, %56 : vector<8x256xf32>
    %58 = arith.addf %52, %57 : vector<8x256xf32>
    %59 = vector.broadcast %1 : vector<8x1xf32> to vector<8x256xf32>
    %60 = arith.addf %58, %59 : vector<8x256xf32>
    %cst_11 = arith.constant 0.000000e+00 : f32
    %61 = vector.broadcast %cst_11 : f32 to vector<8x256xf32>
    %62 = arith.maximumf %60, %61 : vector<8x256xf32>
    %c1_12 = arith.constant 1 : index
    %c0_13 = arith.constant 0 : index
    %c0_14 = arith.constant 0 : index
    %63 = vector.load %arg5[%c1_12, %c0_13, %c0_14] : memref<2x8x256xf32, #tpu.memory_space<vmem>>, vector<1x8x256xf32>
    %64 = vector.shape_cast %63 : vector<1x8x256xf32> to vector<8x256xf32>
    %65 = vector.shape_cast %62 : vector<8x256xf32> to vector<1x8x256xf32>
    tpu.vector_store %arg5[%c1_12, %c0_13, %c0_14], %65 {strides = array<i32>} : memref<2x8x256xf32, #tpu.memory_space<vmem>>, vector<1x8x256xf32>,
    return
  }
  func.func @transform_0(%arg0: i32, %arg1: i32) -> (i32, i32, i32) {
    %c0_i32 = arith.constant 0 : i32
    %c0_i32_0 = arith.constant 0 : i32
    return %arg0, %c0_i32, %arg1 : i32, i32, i32
  }
  func.func @transform_1(%arg0: i32, %arg1: i32) -> (i32, i32) {
    %c0_i32 = arith.constant 0 : i32
    %c0_i32_0 = arith.constant 0 : i32
    %c0_i32_1 = arith.constant 0 : i32
    return %c0_i32, %c0_i32_0 : i32, i32
  }
  func.func @transform_2(%arg0: i32, %arg1: i32) -> (i32, i32) {
    %c0_i32 = arith.constant 0 : i32
    %c0_i32_0 = arith.constant 0 : i32
    %c0_i32_1 = arith.constant 0 : i32
    return %c0_i32, %c0_i32_0 : i32, i32
  }
  func.func @transform_3(%arg0: i32, %arg1: i32) -> (i32, i32, i32) {
    %c0_i32 = arith.constant 0 : i32
    %c0_i32_0 = arith.constant 0 : i32
    return %arg0, %c0_i32, %arg1 : i32, i32, i32
  }
}

</mosaic_0001>

<llo_original>
// kernel: tpu_custom_call.1
$region0: #{tpu_custom_call.1}
  #allocation0 [shape = 'u32[]', space=smem, size = 0x4, offset = 0x4, fixed_abs, tag = 'smem constant byte address 0x4 - core index']
  #allocation1 [shape = 'u32[144,128]{1,0:T(1,128)}', space=vmem, size = 0x12000, scoped, tag = 'internal scratch']
  %s0 = inlined_call_operand.vmem [shape: f32[2,4,256], index: 0, kind: input, shape index: {}]
  %s1 = inlined_call_operand.vmem [shape: f32[8,4], index: 1, kind: input, shape index: {}]
  %s2 = inlined_call_operand.vmem [shape: f32[8,1], index: 2, kind: input, shape index: {}]
  %s3 = inlined_call_operand.hbm [shape: f32[2,8,256], index: 3, kind: output, shape index: {}]
  %s4 = sld [smem:[#allocation0]]
  $region22: #{tpu_custom_call.1} parent=0
    _
  %s6 = ssub.s32 1, %s4
  %s7 = scalar_select 0, %s6, %s4
  $region1: #{tpu_custom_call.1} parent=0
    #allocation2 [shape = 'u8[16384]{0}', space=vmem, size = 0x4000, scoped, tag = 'output window, operand 0, single buffered']
    #allocation3 [shape = 's32[1]{0}', space=sflag, size = 0x4, scoped, tag = 'scoped memory for tpu_custom_call.1']
    %8 = vsyncpa [#allocation3], 0
    // Predicated region
    $region2: #{tpu_custom_call.1} parent=1 // pred_check
      _
    $region3: #{tpu_custom_call.1} parent=1 // pred_check_branch
      %10 = sbr.rel (0) target = $region5
    $region4: #{tpu_custom_call.1} parent=1 // pred_region
      _
    $region5: #{tpu_custom_call.1} parent=1 // pred_fallthru
      _
    // Predicated region
    $region6: #{tpu_custom_call.1} parent=1 // pred_check
      _
    $region7: #{tpu_custom_call.1} parent=1 // pred_check_branch
      %12 = sbr.rel (0) target = $region9
    $region8: #{tpu_custom_call.1} parent=1 // pred_region
      _
    $region9: #{tpu_custom_call.1} parent=1 // pred_fallthru
      _
    // Predicated region
    $region10: #{tpu_custom_call.1} parent=1 // pred_check
      _
    $region11: #{tpu_custom_call.1} parent=1 // pred_check_branch
      %14 = sbr.rel (0) target = $region13
    $region12: #{tpu_custom_call.1} parent=1 // pred_region
      _
    $region13: #{tpu_custom_call.1} parent=1 // pred_fallthru
      _
    %v15 = vld [vmem:[%s1] sm:$0xff]
    %v16 = vld [vmem:[%s2] sm:$0xff]
    %v17 = vld [vmem:[%s0] sm:$0xff]
    %19 = vset.pattern.permute.xlu0 0
    %20 = vperm.xlu0 %19, %v15
    %v21 = vpop.permute.xlu0 %20
    %v24 = vlaneseq
    %v25 = vshrl.u32 %v24, 7
    %v26 = vsub.s32 0, %v25
    %v27 = vrot.slane %v17, %v26
    %v28 = vlaneseq
    %v29 = vshrl.u32 %v28, 7
    %v30 = vsub.s32 4, %v29
    %v31 = vrot.slane %v17, %v30
    %v34 = vlaneseq
    %v35 = vshrl.u32 %v34, 7
    %v36 = vsub.s32 0, %v35
    %v37 = vrot.slane %v27, %v36
    %v38 = vlaneseq
    %v39 = vshrl.u32 %v38, 7
    %v40 = vsub.s32 0, %v39
    %v41 = vrot.slane %v31, %v40
    %v42 = vmul.f32 %v21, %v37
    %v43 = vmul.f32 %v21, %v41
    %44 = vset.pattern.permute.xlu0 1
    %45 = vperm.xlu0 %44, %v15
    %v46 = vpop.permute.xlu0 %45
    %v48 = vlaneseq
    %v49 = vshrl.u32 %v48, 7
    %v50 = vsub.s32 1, %v49
    %v51 = vrot.slane %v17, %v50
    %v52 = vlaneseq
    %v53 = vshrl.u32 %v52, 7
    %v54 = vsub.s32 5, %v53
    %v55 = vrot.slane %v17, %v54
    %v58 = vlaneseq
    %v59 = vshrl.u32 %v58, 7
    %v60 = vsub.s32 1, %v59
    %v61 = vrot.slane %v51, %v60
    %v62 = vlaneseq
    %v63 = vshrl.u32 %v62, 7
    %v64 = vsub.s32 1, %v63
    %v65 = vrot.slane %v55, %v64
    %v66 = vmul.f32 %v46, %v61
    %v67 = vmul.f32 %v46, %v65
    %v68 = vadd.f32 %v42, %v66
    %v69 = vadd.f32 %v43, %v67
    %70 = vset.pattern.permute.xlu0 2
    %71 = vperm.xlu0 %70, %v15
    %v72 = vpop.permute.xlu0 %71
    %v74 = vlaneseq
    %v75 = vshrl.u32 %v74, 7
    %v76 = vsub.s32 2, %v75
    %v77 = vrot.slane %v17, %v76
    %v78 = vlaneseq
    %v79 = vshrl.u32 %v78, 7
    %v80 = vsub.s32 6, %v79
    %v81 = vrot.slane %v17, %v80
    %v84 = vlaneseq
    %v85 = vshrl.u32 %v84, 7
    %v86 = vsub.s32 2, %v85
    %v87 = vrot.slane %v77, %v86
    %v88 = vlaneseq
    %v89 = vshrl.u32 %v88, 7
    %v90 = vsub.s32 2, %v89
    %v91 = vrot.slane %v81, %v90
    %v92 = vmul.f32 %v72, %v87
    %v93 = vmul.f32 %v72, %v91
    %v94 = vadd.f32 %v68, %v92
    %v95 = vadd.f32 %v69, %v93
    %96 = vset.pattern.permute.xlu0 3
    %97 = vperm.xlu0 %96, %v15
    %v98 = vpop.permute.xlu0 %97
    %v100 = vlaneseq
    %v101 = vshrl.u32 %v100, 7
    %v102 = vsub.s32 3, %v101
    %v103 = vrot.slane %v17, %v102
    %v104 = vlaneseq
    %v105 = vshrl.u32 %v104, 7
    %v106 = vsub.s32 7, %v105
    %v107 = vrot.slane %v17, %v106
    %v110 = vlaneseq
    %v111 = vshrl.u32 %v110, 7
    %v112 = vsub.s32 3, %v111
    %v113 = vrot.slane %v103, %v112
    %v114 = vlaneseq
    %v115 = vshrl.u32 %v114, 7
    %v116 = vsub.s32 3, %v115
    %v117 = vrot.slane %v107, %v116
    %v118 = vmul.f32 %v98, %v113
    %v119 = vmul.f32 %v98, %v117
    %v120 = vadd.f32 %v94, %v118
    %v121 = vadd.f32 %v95, %v119
    %123 = vset.pattern.permute.xlu0 0
    %124 = vperm.xlu0 %123, %v16
    %v125 = vpop.permute.xlu0 %124
    %v127 = vadd.f32 %v120, %v125
    %v128 = vadd.f32 %v121, %v125
    %v129 = vmax.f32 %v127, 0.0
    %v130 = vmax.f32 %v128, 0.0
    %131 = vst [vmem:[#allocation2] sm:$0xff] %v129
    %132 = vst [vmem:[#allocation2 + $0x8] sm:$0xff] %v130
    %s133 = scalar_lea.vmem %s0, 8
    %v134 = vld [vmem:[%s133] sm:$0xff]
    %v136 = vlaneseq
    %v137 = vshrl.u32 %v136, 7
    %v138 = vsub.s32 0, %v137
    %v139 = vrot.slane %v134, %v138
    %v140 = vlaneseq
    %v141 = vshrl.u32 %v140, 7
    %v142 = vsub.s32 4, %v141
    %v143 = vrot.slane %v134, %v142
    %v146 = vlaneseq
    %v147 = vshrl.u32 %v146, 7
    %v148 = vsub.s32 0, %v147
    %v149 = vrot.slane %v139, %v148
    %v150 = vlaneseq
    %v151 = vshrl.u32 %v150, 7
    %v152 = vsub.s32 0, %v151
    %v153 = vrot.slane %v143, %v152
    %v154 = vmul.f32 %v21, %v149
    %v155 = vmul.f32 %v21, %v153
    %v156 = vlaneseq
    %v157 = vshrl.u32 %v156, 7
    %v158 = vsub.s32 1, %v157
    %v159 = vrot.slane %v134, %v158
    %v160 = vlaneseq
    %v161 = vshrl.u32 %v160, 7
    %v162 = vsub.s32 5, %v161
    %v163 = vrot.slane %v134, %v162
    %v166 = vlaneseq
    %v167 = vshrl.u32 %v166, 7
    %v168 = vsub.s32 1, %v167
    %v169 = vrot.slane %v159, %v168
    %v170 = vlaneseq
    %v171 = vshrl.u32 %v170, 7
    %v172 = vsub.s32 1, %v171
    %v173 = vrot.slane %v163, %v172
    %v174 = vmul.f32 %v46, %v169
    %v175 = vmul.f32 %v46, %v173
    %v176 = vadd.f32 %v154, %v174
    %v177 = vadd.f32 %v155, %v175
    %v178 = vlaneseq
    %v179 = vshrl.u32 %v178, 7
    %v180 = vsub.s32 2, %v179
    %v181 = vrot.slane %v134, %v180
    %v182 = vlaneseq
    %v183 = vshrl.u32 %v182, 7
    %v184 = vsub.s32 6, %v183
    %v185 = vrot.slane %v134, %v184
    %v188 = vlaneseq
    %v189 = vshrl.u32 %v188, 7
    %v190 = vsub.s32 2, %v189
    %v191 = vrot.slane %v181, %v190
    %v192 = vlaneseq
    %v193 = vshrl.u32 %v192, 7
    %v194 = vsub.s32 2, %v193
    %v195 = vrot.slane %v185, %v194
    %v196 = vmul.f32 %v72, %v191
    %v197 = vmul.f32 %v72, %v195
    %v198 = vadd.f32 %v176, %v196
    %v199 = vadd.f32 %v177, %v197
    %v200 = vlaneseq
    %v201 = vshrl.u32 %v200, 7
    %v202 = vsub.s32 3, %v201
    %v203 = vrot.slane %v134, %v202
    %v204 = vlaneseq
    %v205 = vshrl.u32 %v204, 7
    %v206 = vsub.s32 7, %v205
    %v207 = vrot.slane %v134, %v206
    %v210 = vlaneseq
    %v211 = vshrl.u32 %v210, 7
    %v212 = vsub.s32 3, %v211
    %v213 = vrot.slane %v203, %v212
    %v214 = vlaneseq
    %v215 = vshrl.u32 %v214, 7
    %v216 = vsub.s32 3, %v215
    %v217 = vrot.slane %v207, %v216
    %v218 = vmul.f32 %v98, %v213
    %v219 = vmul.f32 %v98, %v217
    %v220 = vadd.f32 %v198, %v218
    %v221 = vadd.f32 %v199, %v219
    %v222 = vadd.f32 %v220, %v125
    %v223 = vadd.f32 %v221, %v125
    %v224 = vmax.f32 %v222, 0.0
    %v225 = vmax.f32 %v223, 0.0
    %s226 = scalar_lea.vmem [#allocation2], 16
    %227 = vst [vmem:[%s226] sm:$0xff] %v224
    %228 = vst [vmem:[%s226 + $0x8] sm:$0xff] %v225
    // Predicated region
    $region14: #{tpu_custom_call.1} parent=1 // pred_check
      _
    $region15: #{tpu_custom_call.1} parent=1 // pred_check_branch
      %230 = sbr.rel (0) target = $region17
    $region16: #{tpu_custom_call.1} parent=1 // pred_region
      %s232 = ssub.s32 512, 512
      %233 = vsyncadd [#allocation3], %s232
      %s234 = sshll.u32 [#allocation2], 4
      %s235 = int_to_ptr.vmem [resolvable:$true] %s234
      %240 = dma.vmem_to_hbm [thread:$0]  %s235, 512, %s3, [#allocation3], 256, 256, 16
    $region17: #{tpu_custom_call.1} parent=1 // pred_fallthru
      _
    // Predicated region
    $region18: #{tpu_custom_call.1} parent=1 // pred_check
      _
    $region19: #{tpu_custom_call.1} parent=1 // pred_check_branch
      %242 = sbr.rel (0) target = $region21
    $region20: #{tpu_custom_call.1} parent=1 // pred_region
      %243 = dma.done [#allocation3], 512
    $region21: #{tpu_custom_call.1} parent=1 // pred_fallthru
      _
    %244 = vsyncpa [#allocation3], 1

</llo_original>
